<compile_context>
chip_gen: v5e
topology: v5e:2x2
jax: 0.10.0
libtpu: 0.0.40
codegen_flags: <defaults>
</compile_context>

<pallas_src>
import functools

import jax
import jax.numpy as jnp
from jax import lax
from jax.experimental import pallas as pl
from jax.experimental.pallas import tpu as pltpu


def _pad8(x):
    return ((x + 7) // 8) * 8


def _struct_pairwise_kernel(n, c, hidden, offs, z_ref, p_ref, o_ref):
    """Fused pairwise-MLP kernel (channel-major, lane-dense output).

    z_ref: (N, C)   cell embeddings.
    p_ref: (R, Wp)  single packed parameter block:
             rows 0..L-1       : struct-layer biases (row l, cols :H_l)
             rows L..L+1       : final-head bias (column 0)
             rows offs[0]..    : W1[:C]     (C, H1)
             rows offs[1]..    : W1[C:]     (C, H1)
             rows offs[1+l]..  : W_l        (H_{l-1}, H_l), l = 1..L-1
             rows offs[1+L]..  : W_final^T  (2, H_{L-1})
    o_ref: (2, N*N) channel-major distances (re-laid-out to (N, N, 2) in XLA).
    """
    L = len(hidden)
    h1 = hidden[0]
    z = z_ref[...]                                                    # (N, C)

    # pairs[i, j] = [z[j], z[i]]  =>  (pairs @ W1)[i, j] = A[j] + B[i]
    # W1 is pre-split into two 8-aligned (C, H1) blocks: no in-kernel sublane
    # slice / relayout before the MXU pushes.
    a = jnp.dot(z, p_ref[offs[0]:offs[0] + c, :h1],
                preferred_element_type=jnp.float32)                   # (N, H1), by j
    b = jnp.dot(z, p_ref[offs[1]:offs[1] + c, :h1],
                preferred_element_type=jnp.float32)                   # (N, H1), by i
    # Fold the layer-1 bias into the small (N, H1) term before the broadcast.
    b = b + p_ref[0:1, :h1]
    h = jnp.maximum(a[None, :, :] + b[:, None, :], 0.0).reshape(n * n, h1)
    # TODO(synk): F.dropout is a no-op in eval mode (training=False), so it is omitted.

    prev = h1
    for li in range(1, L):                                            # static unroll
        hl = hidden[li]
        w = p_ref[offs[1 + li]:offs[1 + li] + prev, :hl]              # (prev, hl)
        h = jnp.dot(h, w, preferred_element_type=jnp.float32)
        h = jnp.maximum(h + p_ref[li:li + 1, :hl], 0.0)
        prev = hl

    # Final head, channel-major: d[ch, k] = sum_m W_final[m, ch] * h[k, m].
    # W_final is stored transposed -> plain NT dot_general, output lane dim = N*N.
    wf_t = p_ref[offs[1 + L]:offs[1 + L] + 2, :prev]                  # (2, prev)
    d = lax.dot_general(wf_t, h, (((1,), (1,)), ((), ())),
                        preferred_element_type=jnp.float32)           # (2, N*N)
    d = d + p_ref[L:L + 2, 0:1]                                       # final bias
    o_ref[...] = d


def pack_struct_pairwise_params(in_channels, params):
    """Pack ALL weights and biases into one padded f32 block (one DMA descriptor).

    Returns (pack, hidden, offs): packed array, struct-layer widths, and the
    static (8-aligned) row offsets of each weight block.
    """
    c = in_channels
    struct = params["struct"]
    final_w, final_b = params["final"]
    hidden = tuple(int(w.shape[1]) for (w, _) in struct)
    L = len(hidden)
    assert struct[0][0].shape[0] == 2 * c

    hmax = max(max(hidden), 2)
    wpad = ((hmax + 127) // 128) * 128           # lane-dense block width

    offs = []
    row = _pad8(L + 2)                           # bias region (L struct rows + 2 final rows)
    offs.append(row); row += _pad8(c)            # W1[:C]
    offs.append(row); row += _pad8(c)            # W1[C:]
    for li in range(1, L):
        offs.append(row); row += _pad8(hidden[li - 1])
    offs.append(row); row += _pad8(2)            # W_final^T
    total_rows = row

    pack = jnp.zeros((total_rows, wpad), jnp.float32)
    for li, (_, bvec) in enumerate(struct):
        pack = pack.at[li, :hidden[li]].set(bvec)
    pack = pack.at[L:L + 2, 0].set(final_b)
    w1 = struct[0][0]
    pack = pack.at[offs[0]:offs[0] + c, :hidden[0]].set(w1[:c, :])
    pack = pack.at[offs[1]:offs[1] + c, :hidden[0]].set(w1[c:, :])
    for li in range(1, L):
        wl = struct[li][0]
        pack = pack.at[offs[1 + li]:offs[1 + li] + hidden[li - 1], :hidden[li]].set(wl)
    pack = pack.at[offs[1 + L]:offs[1 + L] + 2, :hidden[-1]].set(final_w.T)
    return pack, hidden, tuple(offs)


def make_struct_pairwise_forward(in_channels, params):
    """Pack parameters ONCE and return a jitted forward: z -> {'dists': (N, N, 2)}."""
    pack, hidden, offs = pack_struct_pairwise_params(in_channels, params)
    pack = jax.device_put(pack)
    c = in_channels
    vmem = pl.BlockSpec(memory_space=pltpu.MemorySpace.VMEM)

    @jax.jit
    def forward(z):
        n = z.shape[0]
        # Advisory cost estimate so XLA can schedule around the tiny custom call.
        flops = 2 * (2 * n * c * hidden[0])       # factored first layer (two matmuls)
        prev = hidden[0]
        for hl in hidden[1:]:
            flops += 2 * n * n * prev * hl
            prev = hl
        flops += 2 * n * n * prev * 2             # final head
        bytes_accessed = 4 * (z.size + pack.size + n * n * 2)

        kernel = functools.partial(_struct_pairwise_kernel, n, c, hidden, offs)
        d_cm = pl.pallas_call(
            kernel,
            out_shape=jax.ShapeDtypeStruct((2, n * n), jnp.float32),
            in_specs=[vmem, vmem],
            out_specs=vmem,
            cost_estimate=pl.CostEstimate(flops=int(flops), transcendentals=0,
                                          bytes_accessed=int(bytes_accessed)),
        )(z, pack)
        # Channel-major -> (N, N, 2) re-layout stays in XLA (fused under jit).
        return {"dists": d_cm.reshape(2, n, n).transpose(1, 2, 0)}

    return forward


def reference_forward(z, params):
    """Pure-JAX reference (same math as the PyTorch module, no Pallas)."""
    n, c = z.shape
    rtile = jnp.broadcast_to(z[None, :, :], (n, n, c))   # rtile[i, j] = z[j]
    ctile = jnp.broadcast_to(z[:, None, :], (n, n, c))   # ctile[i, j] = z[i]
    pairs = jnp.concatenate([rtile, ctile], axis=2).reshape(n * n, 2 * c)
    h = pairs
    for w, b in params["struct"]:
        h = jnp.maximum(h @ w + b, 0.0)
    w, b = params["final"]
    d = h @ w + b
    return {"dists": d.reshape(n, n, 2)}


def glorot(key, shape):
    fan_in, fan_out = shape[0], shape[1]
    limit = jnp.sqrt(6.0 / (fan_in + fan_out))
    return jax.random.uniform(key, shape, jnp.float32, -limit, limit)


if __name__ == "__main__":
    key = jax.random.PRNGKey(0)

    # Small shapes consistent with the module.
    num_cells = 16
    in_channels = 8
    emb_dim = 2 * in_channels                 # rtile/ctile concat -> 2C input channels
    struct_layers_out_chnls = [32, 16]
    # dropout_prop is irrelevant in eval mode.

    k_z, k_p = jax.random.split(key)
    z = jax.random.normal(k_z, (num_cells, in_channels), jnp.float32)

    # Deterministic parameters: 1x1 Conv2d weights stored as (Cin, Cout) matrices.
    params = {"struct": [], "final": None}
    prev = emb_dim
    pkeys = jax.random.split(k_p, len(struct_layers_out_chnls) + 1)
    for pk, cout in zip(pkeys[:-1], struct_layers_out_chnls):
        kw, kb = jax.random.split(pk)
        params["struct"].append((glorot(kw, (prev, cout)),
                                 jax.random.uniform(kb, (cout,), jnp.float32, -0.1, 0.1)))
        prev = cout
    kw, kb = jax.random.split(pkeys[-1])
    params["final"] = (glorot(kw, (prev, 2)),
                       jax.random.uniform(kb, (2,), jnp.float32, -0.1, 0.1))

    forward = make_struct_pairwise_forward(in_channels, params)   # packs params once
    out = forward(z)
    dists = jax.block_until_ready(out["dists"])

    ref = reference_forward(z, params)["dists"]
    assert dists.shape == (num_cells, num_cells, 2)
    assert jnp.allclose(dists, ref, atol=1e-4, rtol=1e-4)

    print("KERNEL_OK")
</pallas_src>

<mosaic_0001>
module attributes {stable_mosaic.version = 11 : i64} {
  func.func @_struct_pairwise_kernel(%arg0: memref<16x8xf32, #tpu.memory_space<vmem>>, %arg1: memref<64x128xf32, #tpu.memory_space<vmem>>, %arg2: memref<2x256xf32, #tpu.memory_space<vmem>>) attributes {dimension_semantics = [], scalar_prefetch = 0 : i64, scratch_operands = 0 : i64, tpu.core_type = #tpu.core_type<tc>} {
    %c0 = arith.constant 0 : index
    %c0_0 = arith.constant 0 : index
    %0 = vector.load %arg0[%c0, %c0_0] : memref<16x8xf32, #tpu.memory_space<vmem>>, vector<16x8xf32>
    %c8 = arith.constant 8 : index
    %c0_1 = arith.constant 0 : index
    %1 = vector.load %arg1[%c8, %c0_1] : memref<64x128xf32, #tpu.memory_space<vmem>>, vector<8x32xf32>
    %cst = arith.constant dense<0.000000e+00> : vector<16x32xf32>
    %2 = tpu.matmul %0, %1, %cst {dimension_numbers = #tpu.dot_dimension_numbers<[1], [0], [0], [1], [0, 0, 1, 1], [], []>} : vector<16x8xf32>, vector<8x32xf32>, vector<16x32xf32> -> vector<16x32xf32>
    %c16 = arith.constant 16 : index
    %c0_2 = arith.constant 0 : index
    %3 = vector.load %arg1[%c16, %c0_2] : memref<64x128xf32, #tpu.memory_space<vmem>>, vector<8x32xf32>
    %cst_3 = arith.constant dense<0.000000e+00> : vector<16x32xf32>
    %4 = tpu.matmul %0, %3, %cst_3 {dimension_numbers = #tpu.dot_dimension_numbers<[1], [0], [0], [1], [0, 0, 1, 1], [], []>} : vector<16x8xf32>, vector<8x32xf32>, vector<16x32xf32> -> vector<16x32xf32>
    %c0_4 = arith.constant 0 : index
    %c0_5 = arith.constant 0 : index
    %5 = vector.load %arg1[%c0_4, %c0_5] : memref<64x128xf32, #tpu.memory_space<vmem>>, vector<1x32xf32>
    %6 = vector.broadcast %5 : vector<1x32xf32> to vector<16x32xf32>
    %7 = arith.addf %4, %6 : vector<16x32xf32>
    %8 = vector.shape_cast %2 : vector<16x32xf32> to vector<1x16x32xf32>
    %9 = vector.shape_cast %7 : vector<16x32xf32> to vector<16x1x32xf32>
    %10 = vector.broadcast %8 : vector<1x16x32xf32> to vector<16x16x32xf32>
    %11 = vector.broadcast %9 : vector<16x1x32xf32> to vector<16x16x32xf32>
    %12 = arith.addf %10, %11 : vector<16x16x32xf32>
    %cst_6 = arith.constant 0.000000e+00 : f32
    %13 = vector.broadcast %cst_6 : f32 to vector<16x16x32xf32>
    %14 = arith.maximumf %12, %13 : vector<16x16x32xf32>
    %15 = vector.shape_cast %14 : vector<16x16x32xf32> to vector<256x32xf32>
    %c24 = arith.constant 24 : index
    %c0_7 = arith.constant 0 : index
    %16 = vector.load %arg1[%c24, %c0_7] : memref<64x128xf32, #tpu.memory_space<vmem>>, vector<32x16xf32>
    %cst_8 = arith.constant dense<0.000000e+00> : vector<256x16xf32>
    %17 = tpu.matmul %15, %16, %cst_8 {dimension_numbers = #tpu.dot_dimension_numbers<[1], [0], [0], [1], [0, 0, 1, 1], [], []>} : vector<256x32xf32>, vector<32x16xf32>, vector<256x16xf32> -> vector<256x16xf32>
    %c1 = arith.constant 1 : index
    %c0_9 = arith.constant 0 : index
    %18 = vector.load %arg1[%c1, %c0_9] : memref<64x128xf32, #tpu.memory_space<vmem>>, vector<1x16xf32>
    %19 = vector.broadcast %18 : vector<1x16xf32> to vector<256x16xf32>
    %20 = arith.addf %17, %19 : vector<256x16xf32>
    %cst_10 = arith.constant 0.000000e+00 : f32
    %21 = vector.broadcast %cst_10 : f32 to vector<256x16xf32>
    %22 = arith.maximumf %20, %21 : vector<256x16xf32>
    %c56 = arith.constant 56 : index
    %c0_11 = arith.constant 0 : index
    %23 = vector.load %arg1[%c56, %c0_11] : memref<64x128xf32, #tpu.memory_space<vmem>>, vector<2x16xf32>
    %cst_12 = arith.constant dense<0.000000e+00> : vector<2x256xf32>
    %24 = tpu.matmul %23, %22, %cst_12 {dimension_numbers = #tpu.dot_dimension_numbers<[1], [1], [0], [0], [0, 0, 1, 0], [], []>} : vector<2x16xf32>, vector<256x16xf32>, vector<2x256xf32> -> vector<2x256xf32>
    %c2 = arith.constant 2 : index
    %c0_13 = arith.constant 0 : index
    %25 = vector.load %arg1[%c2, %c0_13] : memref<64x128xf32, #tpu.memory_space<vmem>>, vector<2x1xf32>
    %26 = vector.broadcast %25 : vector<2x1xf32> to vector<2x256xf32>
    %27 = arith.addf %24, %26 : vector<2x256xf32>
    %c0_14 = arith.constant 0 : index
    %c0_15 = arith.constant 0 : index
    %28 = vector.load %arg2[%c0_14, %c0_15] : memref<2x256xf32, #tpu.memory_space<vmem>>, vector<2x256xf32>
    tpu.vector_store %arg2[%c0_14, %c0_15], %27 {strides = array<i32>} : memref<2x256xf32, #tpu.memory_space<vmem>>, vector<2x256xf32>,
    return
  }
}

</mosaic_0001>

<llo_original>
// kernel: forward.1
$region0: #{forward.1}
  #allocation0 [shape = 'u32[]', space=smem, size = 0x4, offset = 0x4, fixed_abs, tag = 'smem constant byte address 0x4 - core index']
  #allocation1 [shape = 'u32[72,128]{1,0:T(1,128)}', space=vmem, size = 0x9000, scoped, tag = 'internal scratch']
  %s0 = inlined_call_operand.vmem [shape: f32[16,8], index: 0, kind: input, shape index: {}]
  %s1 = inlined_call_operand.hbm [shape: f32[64,128], index: 1, kind: input, shape index: {}]
  %s2 = inlined_call_operand.vmem [shape: f32[2,256], index: 2, kind: output, shape index: {}]
  %s3 = sld [smem:[#allocation0]]
  $region22: #{forward.1} parent=0
    _
  %s5 = ssub.s32 1, %s3
  %s6 = scalar_select 0, %s5, %s3
  $region1: #{forward.1} parent=0
    #allocation2 [shape = 'u8[32768]{0}', space=vmem, size = 0x8000, scoped, tag = 'input window, operand 1, single buffered']
    #allocation3 [shape = 's32[1]{0}', space=sflag, size = 0x4, scoped, tag = 'scoped memory for forward.1']
    %7 = vsyncpa [#allocation3], 0
    // Predicated region
    $region2: #{forward.1} parent=1 // pred_check
      _
    $region3: #{forward.1} parent=1 // pred_check_branch
      %9 = sbr.rel (0) target = $region5
    $region4: #{forward.1} parent=1 // pred_region
      _
    $region5: #{forward.1} parent=1 // pred_fallthru
      _
    // Predicated region
    $region6: #{forward.1} parent=1 // pred_check
      _
    $region7: #{forward.1} parent=1 // pred_check_branch
      %11 = sbr.rel (0) target = $region9
    $region8: #{forward.1} parent=1 // pred_region
      %13 = vsyncadd [#allocation3], 0
      %s14 = sshll.u32 %s1, 4
      %s15 = int_to_ptr.hbm [resolvable:$true] %s14
      %s16 = sshll.u32 [#allocation2], 4
      %s17 = int_to_ptr.vmem [resolvable:$true] %s16
      %22 = dma.hbm_to_vmem [thread:$0]  %s15, 1024, %s17, [#allocation3], 128, 128, 8
    $region9: #{forward.1} parent=1 // pred_fallthru
      _
    // Predicated region
    $region10: #{forward.1} parent=1 // pred_check
      _
    $region11: #{forward.1} parent=1 // pred_check_branch
      %24 = sbr.rel (0) target = $region13
    $region12: #{forward.1} parent=1 // pred_region
      %26 = dma.done [#allocation3], 1024
    $region13: #{forward.1} parent=1 // pred_fallthru
      _
    %v27 = vld [vmem:[%s0] sm:$0xff]
    %v28 = vld [vmem:[%s0 + $0x8] sm:$0xff]
    %v29 = vld [vmem:[#allocation2 + $0x8] sm:$0xff]
    %vm30 = vcmask 64512
    %v32 = vsel %vm30, %v27, 0
    %v35 = vsel %vm30, %v28, 0
    %37 = vmatpush.msra.mxu0 0.0
    %38 = vmatpush.msra.mxu0 0.0
    %39 = vmatpush.msra.mxu0 0.0
    %40 = vmatpush.msra.mxu0 0.0
    %41 = vmatpush.msra.mxu0 0.0
    %42 = vmatpush.msra.mxu0 0.0
    %43 = vmatpush.msra.mxu0 0.0
    %44 = vmatpush.msra.mxu0 0.0
    %45 = vmatpush.msra.mxu0 0.0
    %46 = vmatpush.msra.mxu0 0.0
    %47 = vmatpush.msra.mxu0 0.0
    %48 = vmatpush.msra.mxu0 0.0
    %49 = vmatpush.msra.mxu0 0.0
    %50 = vmatpush.msra.mxu0 0.0
    %51 = vmatpush.msra.mxu0 0.0
    %52 = vmatpush.msra.mxu0 %v29
    %53 = vmatmul.f32.gmra.mxu0 %v32
    %v54 = vpop.f32.mrf.mxu0
    %v55 = vadd.f32 0.0, %v54
    %56 = vmatmul.f32.gmra.mxu0 %v35
    %v57 = vpop.f32.mrf.mxu0
    %v58 = vadd.f32 0.0, %v57
    %59 = vdwg.mxu0
    %v60 = vld [vmem:[#allocation2 + $0x10] sm:$0xff]
    %v61 = vld [vmem:[#allocation2] sm:$0x1]
    %v62 = vperm.slane %v61, 0
    %63 = vmatpush.msra.mxu0 0.0
    %64 = vmatpush.msra.mxu0 0.0
    %65 = vmatpush.msra.mxu0 0.0
    %66 = vmatpush.msra.mxu0 0.0
    %67 = vmatpush.msra.mxu0 0.0
    %68 = vmatpush.msra.mxu0 0.0
    %69 = vmatpush.msra.mxu0 0.0
    %70 = vmatpush.msra.mxu0 0.0
    %71 = vmatpush.msra.mxu0 0.0
    %72 = vmatpush.msra.mxu0 0.0
    %73 = vmatpush.msra.mxu0 0.0
    %74 = vmatpush.msra.mxu0 0.0
    %75 = vmatpush.msra.mxu0 0.0
    %76 = vmatpush.msra.mxu0 0.0
    %77 = vmatpush.msra.mxu0 0.0
    %78 = vmatpush.msra.mxu0 %v60
    %79 = vmatmul.f32.gmra.mxu0 %v32
    %v80 = vpop.f32.mrf.mxu0
    %v81 = vadd.f32 %v62, %v80
    %82 = vmatmul.f32.gmra.mxu0 %v35
    %v83 = vpop.f32.mrf.mxu0
    %v84 = vadd.f32 %v62, %v83
    %85 = vdwg.mxu0
    %v88 = vrot.slane %v81, 1
    %v89 = vrot.slane %v81, 2
    %v90 = vrot.slane %v81, 3
    %v91 = vrot.slane %v81, 4
    %v92 = vrot.slane %v81, 5
    %v93 = vrot.slane %v81, 6
    %v94 = vrot.slane %v81, 7
    %v95 = vrot.slane %v84, 1
    %v96 = vrot.slane %v84, 2
    %v97 = vrot.slane %v84, 3
    %v98 = vrot.slane %v84, 4
    %v99 = vrot.slane %v84, 5
    %v100 = vrot.slane %v84, 6
    %v101 = vrot.slane %v84, 7
    %v102 = vperm.slane %v81, 0
    %v103 = vperm.slane %v88, 0
    %v104 = vperm.slane %v89, 0
    %v105 = vperm.slane %v90, 0
    %v106 = vperm.slane %v91, 0
    %v107 = vperm.slane %v92, 0
    %v108 = vperm.slane %v93, 0
    %v109 = vperm.slane %v94, 0
    %v110 = vperm.slane %v84, 0
    %v111 = vperm.slane %v95, 0
    %v112 = vperm.slane %v96, 0
    %v113 = vperm.slane %v97, 0
    %v114 = vperm.slane %v98, 0
    %v115 = vperm.slane %v99, 0
    %v116 = vperm.slane %v100, 0
    %v117 = vperm.slane %v101, 0
    %v134 = vadd.f32 %v55, %v102
    %v135 = vadd.f32 %v58, %v102
    %v136 = vadd.f32 %v55, %v103
    %v137 = vadd.f32 %v58, %v103
    %v138 = vadd.f32 %v55, %v104
    %v139 = vadd.f32 %v58, %v104
    %v140 = vadd.f32 %v55, %v105
    %v141 = vadd.f32 %v58, %v105
    %v142 = vadd.f32 %v55, %v106
    %v143 = vadd.f32 %v58, %v106
    %v144 = vadd.f32 %v55, %v107
    %v145 = vadd.f32 %v58, %v107
    %v146 = vadd.f32 %v55, %v108
    %v147 = vadd.f32 %v58, %v108
    %v148 = vadd.f32 %v55, %v109
    %v149 = vadd.f32 %v58, %v109
    %v150 = vadd.f32 %v55, %v110
    %v151 = vadd.f32 %v58, %v110
    %v152 = vadd.f32 %v55, %v111
    %v153 = vadd.f32 %v58, %v111
    %v154 = vadd.f32 %v55, %v112
    %v155 = vadd.f32 %v58, %v112
    %v156 = vadd.f32 %v55, %v113
    %v157 = vadd.f32 %v58, %v113
    %v158 = vadd.f32 %v55, %v114
    %v159 = vadd.f32 %v58, %v114
    %v160 = vadd.f32 %v55, %v115
    %v161 = vadd.f32 %v58, %v115
    %v162 = vadd.f32 %v55, %v116
    %v163 = vadd.f32 %v58, %v116
    %v164 = vadd.f32 %v55, %v117
    %v165 = vadd.f32 %v58, %v117
    %v166 = vmax.f32 %v134, 0.0
    %v167 = vmax.f32 %v135, 0.0
    %v168 = vmax.f32 %v136, 0.0
    %v169 = vmax.f32 %v137, 0.0
    %v170 = vmax.f32 %v138, 0.0
    %v171 = vmax.f32 %v139, 0.0
    %v172 = vmax.f32 %v140, 0.0
    %v173 = vmax.f32 %v141, 0.0
    %v174 = vmax.f32 %v142, 0.0
    %v175 = vmax.f32 %v143, 0.0
    %v176 = vmax.f32 %v144, 0.0
    %v177 = vmax.f32 %v145, 0.0
    %v178 = vmax.f32 %v146, 0.0
    %v179 = vmax.f32 %v147, 0.0
    %v180 = vmax.f32 %v148, 0.0
    %v181 = vmax.f32 %v149, 0.0
    %v182 = vmax.f32 %v150, 0.0
    %v183 = vmax.f32 %v151, 0.0
    %v184 = vmax.f32 %v152, 0.0
    %v185 = vmax.f32 %v153, 0.0
    %v186 = vmax.f32 %v154, 0.0
    %v187 = vmax.f32 %v155, 0.0
    %v188 = vmax.f32 %v156, 0.0
    %v189 = vmax.f32 %v157, 0.0
    %v190 = vmax.f32 %v158, 0.0
    %v191 = vmax.f32 %v159, 0.0
    %v192 = vmax.f32 %v160, 0.0
    %v193 = vmax.f32 %v161, 0.0
    %v194 = vmax.f32 %v162, 0.0
    %v195 = vmax.f32 %v163, 0.0
    %v196 = vmax.f32 %v164, 0.0
    %v197 = vmax.f32 %v165, 0.0
    %v198 = vld [vmem:[#allocation2 + $0x18] sm:$0xff]
    %v199 = vld [vmem:[#allocation2 + $0x20] sm:$0xff]
    %v200 = vld [vmem:[#allocation2 + $0x28] sm:$0xff]
    %v201 = vld [vmem:[#allocation2 + $0x30] sm:$0xff]
    %v202 = vld [vmem:[#allocation2 + $0x1] sm:$0x1]
    %v203 = vperm.slane %v202, 0
    %vm204 = vcmask 261120
    %v206 = vsel %vm204, %v166, 0
    %v209 = vsel %vm204, %v167, 0
    %v212 = vsel %vm204, %v168, 0
    %v215 = vsel %vm204, %v169, 0
    %v218 = vsel %vm204, %v170, 0
    %v221 = vsel %vm204, %v171, 0
    %v224 = vsel %vm204, %v172, 0
    %v227 = vsel %vm204, %v173, 0
    %v230 = vsel %vm204, %v174, 0
    %v233 = vsel %vm204, %v175, 0
    %v236 = vsel %vm204, %v176, 0
    %v239 = vsel %vm204, %v177, 0
    %v242 = vsel %vm204, %v178, 0
    %v245 = vsel %vm204, %v179, 0
    %v248 = vsel %vm204, %v180, 0
    %v251 = vsel %vm204, %v181, 0
    %v254 = vsel %vm204, %v182, 0
    %v257 = vsel %vm204, %v183, 0
    %v260 = vsel %vm204, %v184, 0
    %v263 = vsel %vm204, %v185, 0
    %v266 = vsel %vm204, %v186, 0
    %v269 = vsel %vm204, %v187, 0
    %v272 = vsel %vm204, %v188, 0
    %v275 = vsel %vm204, %v189, 0
    %v278 = vsel %vm204, %v190, 0
    %v281 = vsel %vm204, %v191, 0
    %v284 = vsel %vm204, %v192, 0
    %v287 = vsel %vm204, %v193, 0
    %v290 = vsel %vm204, %v194, 0
    %v293 = vsel %vm204, %v195, 0
    %v296 = vsel %vm204, %v196, 0
    %v299 = vsel %vm204, %v197, 0
    %301 = vmatpush.msra.mxu0 0.0
    %302 = vmatpush.msra.mxu0 0.0
    %303 = vmatpush.msra.mxu0 0.0
    %304 = vmatpush.msra.mxu0 0.0
    %305 = vmatpush.msra.mxu0 0.0
    %306 = vmatpush.msra.mxu0 0.0
    %307 = vmatpush.msra.mxu0 0.0
    %308 = vmatpush.msra.mxu0 0.0
    %309 = vmatpush.msra.mxu0 0.0
    %310 = vmatpush.msra.mxu0 0.0
    %311 = vmatpush.msra.mxu0 0.0
    %312 = vmatpush.msra.mxu0 0.0
    %313 = vmatpush.msra.mxu0 %v201
    %314 = vmatpush.msra.mxu0 %v200
    %315 = vmatpush.msra.mxu0 %v199
    %316 = vmatpush.msra.mxu0 %v198
    %317 = vmatmul.f32.gmra.mxu0 %v206
    %v318 = vpop.f32.mrf.mxu0
    %v319 = vadd.f32 %v203, %v318
    %320 = vmatmul.f32.gmra.mxu0 %v209
    %v321 = vpop.f32.mrf.mxu0
    %v322 = vadd.f32 %v203, %v321
    %323 = vmatmul.f32.gmra.mxu0 %v212
    %v324 = vpop.f32.mrf.mxu0
    %v325 = vadd.f32 %v203, %v324
    %326 = vmatmul.f32.gmra.mxu0 %v215
    %v327 = vpop.f32.mrf.mxu0
    %v328 = vadd.f32 %v203, %v327
    %329 = vmatmul.f32.gmra.mxu0 %v218
    %v330 = vpop.f32.mrf.mxu0
    %v331 = vadd.f32 %v203, %v330
    %332 = vmatmul.f32.gmra.mxu0 %v221
    %v333 = vpop.f32.mrf.mxu0
    %v334 = vadd.f32 %v203, %v333
    %335 = vmatmul.f32.gmra.mxu0 %v224
    %v336 = vpop.f32.mrf.mxu0
    %v337 = vadd.f32 %v203, %v336
    %338 = vmatmul.f32.gmra.mxu0 %v227
    %v339 = vpop.f32.mrf.mxu0
    %v340 = vadd.f32 %v203, %v339
    %341 = vmatmul.f32.gmra.mxu0 %v230
    %v342 = vpop.f32.mrf.mxu0
    %v343 = vadd.f32 %v203, %v342
    %344 = vmatmul.f32.gmra.mxu0 %v233
    %v345 = vpop.f32.mrf.mxu0
    %v346 = vadd.f32 %v203, %v345
    %347 = vmatmul.f32.gmra.mxu0 %v236
    %v348 = vpop.f32.mrf.mxu0
    %v349 = vadd.f32 %v203, %v348
    %350 = vmatmul.f32.gmra.mxu0 %v239
    %v351 = vpop.f32.mrf.mxu0
    %v352 = vadd.f32 %v203, %v351
    %353 = vmatmul.f32.gmra.mxu0 %v242
    %v354 = vpop.f32.mrf.mxu0
    %v355 = vadd.f32 %v203, %v354
    %356 = vmatmul.f32.gmra.mxu0 %v245
    %v357 = vpop.f32.mrf.mxu0
    %v358 = vadd.f32 %v203, %v357
    %359 = vmatmul.f32.gmra.mxu0 %v248
    %v360 = vpop.f32.mrf.mxu0
    %v361 = vadd.f32 %v203, %v360
    %362 = vmatmul.f32.gmra.mxu0 %v251
    %v363 = vpop.f32.mrf.mxu0
    %v364 = vadd.f32 %v203, %v363
    %365 = vmatmul.f32.gmra.mxu0 %v254
    %v366 = vpop.f32.mrf.mxu0
    %v367 = vadd.f32 %v203, %v366
    %368 = vmatmul.f32.gmra.mxu0 %v257
    %v369 = vpop.f32.mrf.mxu0
    %v370 = vadd.f32 %v203, %v369
    %371 = vmatmul.f32.gmra.mxu0 %v260
    %v372 = vpop.f32.mrf.mxu0
    %v373 = vadd.f32 %v203, %v372
    %374 = vmatmul.f32.gmra.mxu0 %v263
    %v375 = vpop.f32.mrf.mxu0
    %v376 = vadd.f32 %v203, %v375
    %377 = vmatmul.f32.gmra.mxu0 %v266
    %v378 = vpop.f32.mrf.mxu0
    %v379 = vadd.f32 %v203, %v378
    %380 = vmatmul.f32.gmra.mxu0 %v269
    %v381 = vpop.f32.mrf.mxu0
    %v382 = vadd.f32 %v203, %v381
    %383 = vmatmul.f32.gmra.mxu0 %v272
    %v384 = vpop.f32.mrf.mxu0
    %v385 = vadd.f32 %v203, %v384
    %386 = vmatmul.f32.gmra.mxu0 %v275
    %v387 = vpop.f32.mrf.mxu0
    %v388 = vadd.f32 %v203, %v387
    %389 = vmatmul.f32.gmra.mxu0 %v278
    %v390 = vpop.f32.mrf.mxu0
    %v391 = vadd.f32 %v203, %v390
    %392 = vmatmul.f32.gmra.mxu0 %v281
    %v393 = vpop.f32.mrf.mxu0
    %v394 = vadd.f32 %v203, %v393
    %395 = vmatmul.f32.gmra.mxu0 %v284
    %v396 = vpop.f32.mrf.mxu0
    %v397 = vadd.f32 %v203, %v396
    %398 = vmatmul.f32.gmra.mxu0 %v287
    %v399 = vpop.f32.mrf.mxu0
    %v400 = vadd.f32 %v203, %v399
    %401 = vmatmul.f32.gmra.mxu0 %v290
    %v402 = vpop.f32.mrf.mxu0
    %v403 = vadd.f32 %v203, %v402
    %404 = vmatmul.f32.gmra.mxu0 %v293
    %v405 = vpop.f32.mrf.mxu0
    %v406 = vadd.f32 %v203, %v405
    %407 = vmatmul.f32.gmra.mxu0 %v296
    %v408 = vpop.f32.mrf.mxu0
    %v409 = vadd.f32 %v203, %v408
    %410 = vmatmul.f32.gmra.mxu0 %v299
    %v411 = vpop.f32.mrf.mxu0
    %v412 = vadd.f32 %v203, %v411
    %413 = vdwg.mxu0
    %v414 = vmax.f32 %v319, 0.0
    %v415 = vmax.f32 %v322, 0.0
    %v416 = vmax.f32 %v325, 0.0
    %v417 = vmax.f32 %v328, 0.0
    %v418 = vmax.f32 %v331, 0.0
    %v419 = vmax.f32 %v334, 0.0
    %v420 = vmax.f32 %v337, 0.0
    %v421 = vmax.f32 %v340, 0.0
    %v422 = vmax.f32 %v343, 0.0
    %v423 = vmax.f32 %v346, 0.0
    %v424 = vmax.f32 %v349, 0.0
    %v425 = vmax.f32 %v352, 0.0
    %v426 = vmax.f32 %v355, 0.0
    %v427 = vmax.f32 %v358, 0.0
    %v428 = vmax.f32 %v361, 0.0
    %v429 = vmax.f32 %v364, 0.0
    %v430 = vmax.f32 %v367, 0.0
    %v431 = vmax.f32 %v370, 0.0
    %v432 = vmax.f32 %v373, 0.0
    %v433 = vmax.f32 %v376, 0.0
    %v434 = vmax.f32 %v379, 0.0
    %v435 = vmax.f32 %v382, 0.0
    %v436 = vmax.f32 %v385, 0.0
    %v437 = vmax.f32 %v388, 0.0
    %v438 = vmax.f32 %v391, 0.0
    %v439 = vmax.f32 %v394, 0.0
    %v440 = vmax.f32 %v397, 0.0
    %v441 = vmax.f32 %v400, 0.0
    %v442 = vmax.f32 %v403, 0.0
    %v443 = vmax.f32 %v406, 0.0
    %v444 = vmax.f32 %v409, 0.0
    %v445 = vmax.f32 %v412, 0.0
    %v446 = vld [vmem:[#allocation2 + $0x38] sm:$0x3]
    %v447 = vld [vmem:[#allocation2 + $0x2] sm:$0x3]
    %449 = vset.pattern.permute.xlu0 0
    %450 = vperm.xlu0 %449, %v447
    %v451 = vpop.permute.xlu0 %450
    %vm453 = vcmask 130048
    %v455 = vsel %vm453, %v446, 0
    %v458 = vsel %vm453, %v414, 0
    %v461 = vsel %vm453, %v415, 0
    %v464 = vsel %vm453, %v416, 0
    %v467 = vsel %vm453, %v417, 0
    %v470 = vsel %vm453, %v418, 0
    %v473 = vsel %vm453, %v419, 0
    %v476 = vsel %vm453, %v420, 0
    %v479 = vsel %vm453, %v421, 0
    %v482 = vsel %vm453, %v422, 0
    %v485 = vsel %vm453, %v423, 0
    %v488 = vsel %vm453, %v424, 0
    %v491 = vsel %vm453, %v425, 0
    %v494 = vsel %vm453, %v426, 0
    %v497 = vsel %vm453, %v427, 0
    %v500 = vsel %vm453, %v428, 0
    %v503 = vsel %vm453, %v429, 0
    %v506 = vsel %vm453, %v430, 0
    %v509 = vsel %vm453, %v431, 0
    %v512 = vsel %vm453, %v432, 0
    %v515 = vsel %vm453, %v433, 0
    %v518 = vsel %vm453, %v434, 0
    %v521 = vsel %vm453, %v435, 0
    %v524 = vsel %vm453, %v436, 0
    %v527 = vsel %vm453, %v437, 0
    %v530 = vsel %vm453, %v438, 0
    %v533 = vsel %vm453, %v439, 0
    %v536 = vsel %vm453, %v440, 0
    %v539 = vsel %vm453, %v441, 0
    %v542 = vsel %vm453, %v442, 0
    %v545 = vsel %vm453, %v443, 0
    %v548 = vsel %vm453, %v444, 0
    %v551 = vsel %vm453, %v445, 0
    %553 = vmatpush.xpose.msra.mxu0 %v503
    %554 = vmatpush.xpose.msra.mxu0 %v500
    %555 = vmatpush.xpose.msra.mxu0 %v497
    %556 = vmatpush.xpose.msra.mxu0 %v494
    %557 = vmatpush.xpose.msra.mxu0 %v491
    %558 = vmatpush.xpose.msra.mxu0 %v488
    %559 = vmatpush.xpose.msra.mxu0 %v485
    %560 = vmatpush.xpose.msra.mxu0 %v482
    %561 = vmatpush.xpose.msra.mxu0 %v479
    %562 = vmatpush.xpose.msra.mxu0 %v476
    %563 = vmatpush.xpose.msra.mxu0 %v473
    %564 = vmatpush.xpose.msra.mxu0 %v470
    %565 = vmatpush.xpose.msra.mxu0 %v467
    %566 = vmatpush.xpose.msra.mxu0 %v464
    %567 = vmatpush.xpose.msra.mxu0 %v461
    %568 = vmatpush.xpose.msra.mxu0 %v458
    %569 = vmatmul.f32.gmra.mxu0 %v455
    %v570 = vpop.f32.mrf.mxu0
    %v571 = vadd.f32 %v451, %v570
    %572 = vdwg.mxu0
    %573 = vmatpush.xpose.msra.mxu0 %v551
    %574 = vmatpush.xpose.msra.mxu0 %v548
    %575 = vmatpush.xpose.msra.mxu0 %v545
    %576 = vmatpush.xpose.msra.mxu0 %v542
    %577 = vmatpush.xpose.msra.mxu0 %v539
    %578 = vmatpush.xpose.msra.mxu0 %v536
    %579 = vmatpush.xpose.msra.mxu0 %v533
    %580 = vmatpush.xpose.msra.mxu0 %v530
    %581 = vmatpush.xpose.msra.mxu0 %v527
    %582 = vmatpush.xpose.msra.mxu0 %v524
    %583 = vmatpush.xpose.msra.mxu0 %v521
    %584 = vmatpush.xpose.msra.mxu0 %v518
    %585 = vmatpush.xpose.msra.mxu0 %v515
    %586 = vmatpush.xpose.msra.mxu0 %v512
    %587 = vmatpush.xpose.msra.mxu0 %v509
    %588 = vmatpush.xpose.msra.mxu0 %v506
    %589 = vmatmul.f32.gmra.mxu0 %v455
    %v590 = vpop.f32.mrf.mxu0
    %v591 = vadd.f32 %v451, %v590
    %592 = vdwg.mxu0
    %v595 = vrot.slane %v591, 6
    %vm596 = vcmask 1041408
    %v597 = vsel %vm596, %v571, %v595
    %599 = vst [vmem:[%s2] sm:$0xf] %v597
    // Predicated region
    $region14: #{forward.1} parent=1 // pred_check
      _
    $region15: #{forward.1} parent=1 // pred_check_branch
      %601 = sbr.rel (0) target = $region17
    $region16: #{forward.1} parent=1 // pred_region
      _
    $region17: #{forward.1} parent=1 // pred_fallthru
      _
    // Predicated region
    $region18: #{forward.1} parent=1 // pred_check
      _
    $region19: #{forward.1} parent=1 // pred_check_branch
      %603 = sbr.rel (0) target = $region21
    $region20: #{forward.1} parent=1 // pred_region
      _
    $region21: #{forward.1} parent=1 // pred_fallthru
      _
    %604 = vsyncpa [#allocation3], 1

</llo_original>
